<compile_context>
chip_gen: v5e
topology: v5e:2x2
jax: 0.10.0
libtpu: 0.0.40
codegen_flags: <defaults>
</compile_context>

<pallas_src>
import functools

import jax
import jax.numpy as jnp
from jax.experimental import pallas as pl
from jax.experimental.pallas import tpu as pltpu


_LANE = 128
_BF16_SUBLANE = 16
# Budget for the streamed layer-0 operands (x tile + w0 K-slice, both bf16 and
# double-buffered).  Kept well under v7x's 64 MiB physical VMEM.
_L0_STREAM_BUDGET = 24 * 1024 * 1024
_VMEM_LIMIT_CAP = 56 * 1024 * 1024     # <= ~56 MiB keeps v7x (64 MiB) safe


def _round_up(n, m):
    return ((n + m - 1) // m) * m


def _pnn_kernel(x_ref, *refs, num_layers, k_steps, res_in_bf16):
    """Fused PNN forward over one batch tile (and one K-slice of layer 0).

    refs = (w0_t, ..., w_{num_layers-1}_t, w_logits_t, out_ref[, acc_ref]).
    Weight refs are pre-transposed to (in, out) bf16; only layer 0's in-dim is
    zero-padded (to match the zero-padded lanes of x).  All matmuls take bf16
    MXU inputs and accumulate in f32; ReLU / residual run on the f32 values so
    the math mirrors the PyTorch forward.
    """
    w_refs = refs[:num_layers + 1]
    o_ref = refs[num_layers + 1]

    def run_tail(h0_f32):
        # h0_f32: f32 pre-activation of layer 0 for this batch tile.
        act_f32 = jnp.maximum(h0_f32, 0.0)               # ReLU (layer 0)
        act_bf16 = act_f32.astype(jnp.bfloat16)
        res = None
        for i in range(1, num_layers):
            if i % 2 == 1:
                # torch: y = out  (activation entering layer i)
                res = act_bf16 if res_in_bf16 else act_f32
            h = jnp.dot(act_bf16, w_refs[i][...],
                        preferred_element_type=jnp.float32)   # Linear, no bias
            if i % 2 == 0:
                # torch: out = out + y (pre-ReLU), only for even i > 0
                h = h + (res.astype(jnp.float32) if res_in_bf16 else res)
            act_f32 = jnp.maximum(h, 0.0)                 # ReLU
            act_bf16 = act_f32.astype(jnp.bfloat16)
        logits = jnp.dot(act_bf16, w_refs[num_layers][...],
                         preferred_element_type=jnp.float32)  # logits Linear
        o_ref[...] = logits.astype(o_ref.dtype)

    if k_steps == 1:
        # Whole layer-0 contraction in one shot; no accumulator needed.
        run_tail(jnp.dot(x_ref[...], w_refs[0][...],
                         preferred_element_type=jnp.float32))
    else:
        # Layer 0 is K-tiled: accumulate partial products in f32 scratch,
        # run the rest of the network only on the last K step.
        acc_ref = refs[num_layers + 2]
        k = pl.program_id(1)

        @pl.when(k == 0)
        def _():
            acc_ref[...] = jnp.zeros_like(acc_ref)

        acc_ref[...] += jnp.dot(x_ref[...], w_refs[0][...],
                                preferred_element_type=jnp.float32)

        @pl.when(k == k_steps - 1)
        def _():
            run_tail(acc_ref[...])


def prepare_pnn_weights(weights):
    """One-time weight prep (hoisted out of the jitted forward).

    * transpose PyTorch-style (out_f, in_f) weights to (in_f, out_f)
    * cast to bf16 (native MXU input dtype; accumulation stays f32 in-kernel)
    * ZERO-pad only layer 0's in-dim to a multiple of 128 lanes so it lines up
      with the zero-padded flattened input.  Hidden / output dims are left
      unpadded: full-array blocks satisfy the TPU layout rules and Mosaic pads
      lanes in VMEM anyway, so padding them in HBM would only waste HBM/DMA.

    NOTE (correctness invariant): the padding MUST be zeros -- zero columns of
    x times zero rows of w0 contribute nothing to the matmul.
    """
    prepared = []
    for li, w in enumerate(weights):
        wt = w.T.astype(jnp.bfloat16)            # (in_f, out_f)
        if li == 0:
            in_f = wt.shape[0]
            in_p = _round_up(in_f, _LANE)
            if in_p != in_f:
                wt = jnp.pad(wt, ((0, in_p - in_f), (0, 0)))  # zero-pad only
        prepared.append(wt)
    # Inter-layer shape consistency (documents the invariant the kernel uses).
    for a, b in zip(prepared[:-1], prepared[1:]):
        assert a.shape[1] == b.shape[0], "layer out/in feature mismatch"
    return prepared


def _choose_tile_b(B):
    # bf16 activations -> batch tile must be a multiple of 16 sublanes.
    if B < 32:
        return _round_up(B, _BF16_SUBLANE)
    # Guarantee >= 2 grid steps over batch so the "parallel" axis can shard
    # across both TensorCores on v7x.  Cap at 128 (fills the MXU M dimension;
    # v5e gains nothing beyond 128).
    # TODO(synk): on v6e with B >= 512 a 256-row tile amortizes per-step
    # overhead slightly better; 128 is kept as the portable default.
    return min(128, _round_up((B + 1) // 2, _BF16_SUBLANE))


def _choose_k_steps(Dp, h0_out, tile_b):
    """Smallest K split (dividing Dp/128) such that the streamed layer-0
    operands (x tile + w0 slice, bf16, double-buffered) fit the budget."""
    blocks = Dp // _LANE
    for ks in range(1, blocks + 1):
        if blocks % ks != 0:
            continue
        per_step_bytes = 2 * 2 * (Dp // ks) * (h0_out + tile_b)  # 2 bufs, bf16
        if per_step_bytes <= _L0_STREAM_BUDGET:
            return ks
    return blocks


@jax.jit
def pnn_forward(x, w_t):
    """x: (B, ...) (flattened inside, matching torch x.view(B, -1)).
    w_t: output of prepare_pnn_weights.  Returns (B, num_classes) f32 logits."""
    B = x.shape[0]
    x_flat = x.reshape(B, -1).astype(jnp.bfloat16)   # cast fuses with reshape
    D = x_flat.shape[1]

    num_layers = len(w_t) - 1
    assert num_layers >= 1, "kernel assumes at least one hidden PNN layer"
    Dp = w_t[0].shape[0]               # layer-0 in-dim, zero-padded to 128
    H0 = w_t[0].shape[1]               # num_filters (unpadded)
    C = w_t[-1].shape[1]               # num_output_classes (unpadded)
    assert Dp == _round_up(D, _LANE), "weights were prepared for another input"

    TILE_B = _choose_tile_b(B)
    Bp = _round_up(B, TILE_B)
    k_steps = _choose_k_steps(Dp, H0, TILE_B)
    TK = Dp // k_steps

    # Pad only when actually needed (the pad is an extra XLA pass over x) and
    # only on the deficient dim(s).  Padding is zeros (see invariant above).
    if Bp != B or Dp != D:
        x_flat = jnp.pad(x_flat, ((0, Bp - B), (0, Dp - D)))

    kernel = functools.partial(_pnn_kernel, num_layers=num_layers,
                               k_steps=k_steps,
                               res_in_bf16=(H0 >= 1024))

    in_specs = [pl.BlockSpec((TILE_B, TK), lambda i, k: (i, k))]
    if k_steps == 1:
        # Layer-0 weight fully VMEM-resident; constant index -> single buffer.
        in_specs.append(pl.BlockSpec((Dp, H0), lambda i, k: (0, 0),
                                     pipeline_mode=pl.Buffered(1)))
    else:
        # Streamed over K (default double buffering hides the DMA).
        in_specs.append(pl.BlockSpec((TK, H0), lambda i, k: (k, 0)))
    # Remaining weights never change across the grid: single-buffer them to
    # halve their VMEM footprint (they stay resident via the constant index).
    for w in w_t[1:]:
        in_specs.append(pl.BlockSpec(w.shape, lambda i, k: (0, 0),
                                     pipeline_mode=pl.Buffered(1)))

    scratch_shapes = []
    if k_steps > 1:
        scratch_shapes.append(pltpu.VMEM((TILE_B, H0), jnp.float32))

    # Advisory cost estimate so XLA schedules the surrounding reshape / cast /
    # slice sensibly around the custom call.
    flops = 2 * Bp * sum(w.shape[0] * w.shape[1] for w in w_t)
    bytes_accessed = Bp * Dp * 2 + sum(w.size * 2 for w in w_t) + Bp * C * 4
    cost = pl.CostEstimate(flops=flops, transcendentals=0,
                           bytes_accessed=bytes_accessed)

    # Explicit VMEM budget (v7x: 64 MiB physical / 32 MiB default scoped).
    resident_w_bytes = sum(w.size * 2 for w in w_t[1:])
    if k_steps == 1:
        resident_w_bytes += w_t[0].size * 2
        streamed_bytes = 2 * TILE_B * TK * 2
    else:
        streamed_bytes = 2 * 2 * TK * (TILE_B + H0)
    act_bytes = TILE_B * max(H0, C) * 4 * 4 + TILE_B * H0 * 4
    out_bytes = 2 * TILE_B * C * 4
    needed = streamed_bytes + resident_w_bytes + act_bytes + out_bytes
    vmem_limit = int(min(_VMEM_LIMIT_CAP,
                         max(2 * needed, 16 * 1024 * 1024)))

    out = pl.pallas_call(
        kernel,
        out_shape=jax.ShapeDtypeStruct((Bp, C), jnp.float32),
        grid=(Bp // TILE_B, k_steps),
        in_specs=in_specs,
        out_specs=pl.BlockSpec((TILE_B, C), lambda i, k: (i, 0)),
        scratch_shapes=scratch_shapes,
        compiler_params=pltpu.CompilerParams(
            dimension_semantics=("parallel", "arbitrary"),
            vmem_limit_bytes=vmem_limit),
        cost_estimate=cost,
    )(x_flat, *w_t)

    return out[:B] if Bp != B else out


def pnn_reference_f32(x, weights):
    """Plain-JAX f32 reference mirroring the PyTorch forward exactly."""
    out = x.reshape(x.shape[0], -1).astype(jnp.float32)
    num_layers = len(weights) - 1
    y = None
    for i in range(num_layers):
        if i % 2 == 1:
            y = out
        out = out @ weights[i].T
        if i % 2 == 0 and i > 0:
            out = out + y
        out = jnp.maximum(out, 0.0)
    return out @ weights[num_layers].T


def pnn_reference_bf16(x, weights):
    """Reference mirroring the kernel numerics (bf16 MXU inputs, f32 accum)."""
    out = x.reshape(x.shape[0], -1).astype(jnp.float32)
    num_layers = len(weights) - 1
    y = None
    for i in range(num_layers):
        if i % 2 == 1:
            y = out
        h = jnp.dot(out.astype(jnp.bfloat16), weights[i].T.astype(jnp.bfloat16),
                    preferred_element_type=jnp.float32)
        if i % 2 == 0 and i > 0:
            h = h + y
        out = jnp.maximum(h, 0.0)
    return jnp.dot(out.astype(jnp.bfloat16),
                   weights[num_layers].T.astype(jnp.bfloat16),
                   preferred_element_type=jnp.float32)


def init_pnn_params(key, flat_dim, num_filters, num_layers, num_classes):
    """Deterministic (uniform +/- 1/sqrt(fan_in)) init, PyTorch Linear shapes."""
    weights = []
    in_f = flat_dim
    for _ in range(num_layers):
        key, sub = jax.random.split(key)
        bound = 1.0 / jnp.sqrt(in_f)
        weights.append(jax.random.uniform(
            sub, (num_filters, in_f), jnp.float32, -bound, bound))
        in_f = num_filters
    key, sub = jax.random.split(key)
    bound = 1.0 / jnp.sqrt(in_f)
    weights.append(jax.random.uniform(
        sub, (num_classes, in_f), jnp.float32, -bound, bound))
    return weights


if __name__ == "__main__":
    # Small shapes consistent with the module: NCHW input, flattened inside.
    B, C, H, W = 2, 4, 16, 16          # input_shape = (2, 4, 16, 16) -> D=1024
    num_filters = 32
    num_layers = 3                     # odd layer count exercises the residual
    num_classes = 10
    # use_bias=False (module default), so Linear layers have no bias terms.

    key = jax.random.PRNGKey(0)
    key, kx = jax.random.split(key)
    x = jax.random.normal(kx, (B, C, H, W), jnp.float32)
    weights = init_pnn_params(key, C * H * W, num_filters, num_layers,
                              num_classes)

    # One-time weight prep (transpose + bf16 cast + zero-pad of layer-0 in-dim),
    # hoisted out of the jitted forward.
    w_prepared = prepare_pnn_weights(weights)

    out = pnn_forward(x, w_prepared)
    out = jax.block_until_ready(out)
    assert out.shape == (B, num_classes)

    # Tight check vs. a reference that mirrors the kernel's bf16-MXU math.
    ref_bf16 = pnn_reference_bf16(x, weights)
    assert jnp.allclose(out, ref_bf16, atol=1e-3, rtol=1e-3), \
        "mismatch vs bf16-mirror reference"

    # Looser semantics check vs. the exact f32 PyTorch-style math (bf16 MXU
    # inputs introduce ~1e-3 relative error).
    ref_f32 = pnn_reference_f32(x, weights)
    assert jnp.allclose(out, ref_f32, atol=5e-2, rtol=5e-2), \
        "mismatch vs f32 reference"

    print("KERNEL_OK")
</pallas_src>

<mosaic_0001>
module attributes {stable_mosaic.version = 11 : i64} {
  func.func @_pnn_kernel(%arg0: i32, %arg1: i32, %arg2: memref<16x1024xbf16, #tpu.memory_space<vmem>>, %arg3: memref<1024x32xbf16, #tpu.memory_space<vmem>>, %arg4: memref<32x32xbf16, #tpu.memory_space<vmem>>, %arg5: memref<32x32xbf16, #tpu.memory_space<vmem>>, %arg6: memref<32x10xbf16, #tpu.memory_space<vmem>>, %arg7: memref<16x10xf32, #tpu.memory_space<vmem>>) attributes {dimension_semantics = [#tpu.dimension_semantics<parallel>, #tpu.dimension_semantics<arbitrary>], iteration_bounds = array<i64: 1, 1>, scalar_prefetch = 0 : i64, scratch_operands = 0 : i64, tpu.core_type = #tpu.core_type<tc>, window_params = [{transform_indices = @transform_0, window_bounds = array<i64: 16, 1024>}, {pipeline_mode = #tpu.pipeline_mode<synchronous>, transform_indices = @transform_1, window_bounds = array<i64: 1024, 32>}, {pipeline_mode = #tpu.pipeline_mode<synchronous>, transform_indices = @transform_2, window_bounds = array<i64: 32, 32>}, {pipeline_mode = #tpu.pipeline_mode<synchronous>, transform_indices = @transform_3, window_bounds = array<i64: 32, 32>}, {pipeline_mode = #tpu.pipeline_mode<synchronous>, transform_indices = @transform_4, window_bounds = array<i64: 32, 10>}, {transform_indices = @transform_5, window_bounds = array<i64: 16, 10>}]} {
    %c0 = arith.constant 0 : index
    %c0_0 = arith.constant 0 : index
    %0 = vector.load %arg2[%c0, %c0_0] : memref<16x1024xbf16, #tpu.memory_space<vmem>>, vector<16x1024xbf16>
    %c0_1 = arith.constant 0 : index
    %c0_2 = arith.constant 0 : index
    %1 = vector.load %arg3[%c0_1, %c0_2] : memref<1024x32xbf16, #tpu.memory_space<vmem>>, vector<1024x32xbf16>
    %cst = arith.constant dense<0.000000e+00> : vector<16x32xf32>
    %2 = tpu.matmul %0, %1, %cst {dimension_numbers = #tpu.dot_dimension_numbers<[1], [0], [0], [1], [0, 0, 1, 1], [], []>} : vector<16x1024xbf16>, vector<1024x32xbf16>, vector<16x32xf32> -> vector<16x32xf32>
    %cst_3 = arith.constant 0.000000e+00 : f32
    %3 = vector.broadcast %cst_3 : f32 to vector<16x32xf32>
    %4 = arith.maximumf %2, %3 : vector<16x32xf32>
    %5 = arith.truncf %4 : vector<16x32xf32> to vector<16x32xbf16>
    %c0_4 = arith.constant 0 : index
    %c0_5 = arith.constant 0 : index
    %6 = vector.load %arg4[%c0_4, %c0_5] : memref<32x32xbf16, #tpu.memory_space<vmem>>, vector<32x32xbf16>
    %cst_6 = arith.constant dense<0.000000e+00> : vector<16x32xf32>
    %7 = tpu.matmul %5, %6, %cst_6 {dimension_numbers = #tpu.dot_dimension_numbers<[1], [0], [0], [1], [0, 0, 1, 1], [], []>} : vector<16x32xbf16>, vector<32x32xbf16>, vector<16x32xf32> -> vector<16x32xf32>
    %cst_7 = arith.constant 0.000000e+00 : f32
    %8 = vector.broadcast %cst_7 : f32 to vector<16x32xf32>
    %9 = arith.maximumf %7, %8 : vector<16x32xf32>
    %10 = arith.truncf %9 : vector<16x32xf32> to vector<16x32xbf16>
    %c0_8 = arith.constant 0 : index
    %c0_9 = arith.constant 0 : index
    %11 = vector.load %arg5[%c0_8, %c0_9] : memref<32x32xbf16, #tpu.memory_space<vmem>>, vector<32x32xbf16>
    %cst_10 = arith.constant dense<0.000000e+00> : vector<16x32xf32>
    %12 = tpu.matmul %10, %11, %cst_10 {dimension_numbers = #tpu.dot_dimension_numbers<[1], [0], [0], [1], [0, 0, 1, 1], [], []>} : vector<16x32xbf16>, vector<32x32xbf16>, vector<16x32xf32> -> vector<16x32xf32>
    %13 = arith.addf %12, %4 : vector<16x32xf32>
    %cst_11 = arith.constant 0.000000e+00 : f32
    %14 = vector.broadcast %cst_11 : f32 to vector<16x32xf32>
    %15 = arith.maximumf %13, %14 : vector<16x32xf32>
    %16 = arith.truncf %15 : vector<16x32xf32> to vector<16x32xbf16>
    %c0_12 = arith.constant 0 : index
    %c0_13 = arith.constant 0 : index
    %17 = vector.load %arg6[%c0_12, %c0_13] : memref<32x10xbf16, #tpu.memory_space<vmem>>, vector<32x10xbf16>
    %cst_14 = arith.constant dense<0.000000e+00> : vector<16x10xf32>
    %18 = tpu.matmul %16, %17, %cst_14 {dimension_numbers = #tpu.dot_dimension_numbers<[1], [0], [0], [1], [0, 0, 1, 1], [], []>} : vector<16x32xbf16>, vector<32x10xbf16>, vector<16x10xf32> -> vector<16x10xf32>
    %c0_15 = arith.constant 0 : index
    %c0_16 = arith.constant 0 : index
    %19 = vector.load %arg7[%c0_15, %c0_16] : memref<16x10xf32, #tpu.memory_space<vmem>>, vector<16x10xf32>
    tpu.vector_store %arg7[%c0_15, %c0_16], %18 {strides = array<i32>} : memref<16x10xf32, #tpu.memory_space<vmem>>, vector<16x10xf32>,
    return
  }
  func.func @transform_0(%arg0: i32, %arg1: i32) -> (i32, i32) {
    %c0_i32 = arith.constant 0 : i32
    return %arg0, %arg1 : i32, i32
  }
  func.func @transform_1(%arg0: i32, %arg1: i32) -> (i32, i32) {
    %c0_i32 = arith.constant 0 : i32
    %c0_i32_0 = arith.constant 0 : i32
    %c0_i32_1 = arith.constant 0 : i32
    return %c0_i32, %c0_i32_0 : i32, i32
  }
  func.func @transform_2(%arg0: i32, %arg1: i32) -> (i32, i32) {
    %c0_i32 = arith.constant 0 : i32
    %c0_i32_0 = arith.constant 0 : i32
    %c0_i32_1 = arith.constant 0 : i32
    return %c0_i32, %c0_i32_0 : i32, i32
  }
  func.func @transform_3(%arg0: i32, %arg1: i32) -> (i32, i32) {
    %c0_i32 = arith.constant 0 : i32
    %c0_i32_0 = arith.constant 0 : i32
    %c0_i32_1 = arith.constant 0 : i32
    return %c0_i32, %c0_i32_0 : i32, i32
  }
  func.func @transform_4(%arg0: i32, %arg1: i32) -> (i32, i32) {
    %c0_i32 = arith.constant 0 : i32
    %c0_i32_0 = arith.constant 0 : i32
    %c0_i32_1 = arith.constant 0 : i32
    return %c0_i32, %c0_i32_0 : i32, i32
  }
  func.func @transform_5(%arg0: i32, %arg1: i32) -> (i32, i32) {
    %c0_i32 = arith.constant 0 : i32
    %c0_i32_0 = arith.constant 0 : i32
    return %arg0, %c0_i32 : i32, i32
  }
}

</mosaic_0001>

<llo_original>
// kernel: pnn_forward.1
$region0: #{pnn_forward.1}
  #allocation0 [shape = 'u32[]', space=smem, size = 0x4, offset = 0x4, fixed_abs, tag = 'smem constant byte address 0x4 - core index']
  #allocation1 [shape = 'u32[72,128]{1,0:T(1,128)}', space=vmem, size = 0x9000, scoped, tag = 'internal scratch']
  %s0 = inlined_call_operand.vmem [shape: bf16[16,1024], index: 0, kind: input, shape index: {}]
  %s1 = inlined_call_operand.vmem [shape: bf16[1024,32], index: 1, kind: input, shape index: {}]
  %s2 = inlined_call_operand.vmem [shape: bf16[32,32], index: 2, kind: input, shape index: {}]
  %s3 = inlined_call_operand.vmem [shape: bf16[32,32], index: 3, kind: input, shape index: {}]
  %s4 = inlined_call_operand.vmem [shape: bf16[32,10], index: 4, kind: input, shape index: {}]
  %s5 = inlined_call_operand.vmem [shape: f32[16,10], index: 5, kind: output, shape index: {}]
  %s6 = sld [smem:[#allocation0]]
  $region30: #{pnn_forward.1} parent=0
    _
  %s8 = ssub.s32 1, %s6
  %s9 = scalar_select 0, %s8, %s6
  // Predicated region
  $region2: #{pnn_forward.1} parent=0 // pred_check
    _
  $region3: #{pnn_forward.1} parent=0 // pred_check_branch
    %11 = sbr.rel (0) target = $region5
  $region4: #{pnn_forward.1} parent=0 // pred_region
    _
  $region5: #{pnn_forward.1} parent=0 // pred_fallthru
    _
  // Predicated region
  $region6: #{pnn_forward.1} parent=0 // pred_check
    _
  $region7: #{pnn_forward.1} parent=0 // pred_check_branch
    %13 = sbr.rel (0) target = $region9
  $region8: #{pnn_forward.1} parent=0 // pred_region
    _
  $region9: #{pnn_forward.1} parent=0 // pred_fallthru
    _
  // Predicated region
  $region10: #{pnn_forward.1} parent=0 // pred_check
    _
  $region11: #{pnn_forward.1} parent=0 // pred_check_branch
    %15 = sbr.rel (0) target = $region13
  $region12: #{pnn_forward.1} parent=0 // pred_region
    _
  $region13: #{pnn_forward.1} parent=0 // pred_fallthru
    _
  // Predicated region
  $region14: #{pnn_forward.1} parent=0 // pred_check
    _
  $region15: #{pnn_forward.1} parent=0 // pred_check_branch
    %17 = sbr.rel (0) target = $region17
  $region16: #{pnn_forward.1} parent=0 // pred_region
    _
  $region17: #{pnn_forward.1} parent=0 // pred_fallthru
    _
  // Predicated region
  $region18: #{pnn_forward.1} parent=0 // pred_check
    _
  $region19: #{pnn_forward.1} parent=0 // pred_check_branch
    %19 = sbr.rel (0) target = $region21
  $region20: #{pnn_forward.1} parent=0 // pred_region
    _
  $region21: #{pnn_forward.1} parent=0 // pred_fallthru
    _
  %v21 = vld [vmem:[%s0] sm:$0xff]
  %v22 = vld [vmem:[%s0 + $0x8] sm:$0xff]
  %v23 = vld [vmem:[%s0 + $0x10] sm:$0xff]
  %v24 = vld [vmem:[%s0 + $0x18] sm:$0xff]
  %v25 = vld [vmem:[%s0 + $0x20] sm:$0xff]
  %v26 = vld [vmem:[%s0 + $0x28] sm:$0xff]
  %v27 = vld [vmem:[%s0 + $0x30] sm:$0xff]
  %v28 = vld [vmem:[%s0 + $0x38] sm:$0xff]
  %v29 = vld [vmem:[%s1] sm:$0xf]
  %v30 = vld [vmem:[%s1 + $0x4] sm:$0xf]
  %v31 = vld [vmem:[%s1 + $0x8] sm:$0xf]
  %v32 = vld [vmem:[%s1 + $0xc] sm:$0xf]
  %v33 = vld [vmem:[%s1 + $0x10] sm:$0xf]
  %v34 = vld [vmem:[%s1 + $0x14] sm:$0xf]
  %v35 = vld [vmem:[%s1 + $0x18] sm:$0xf]
  %v36 = vld [vmem:[%s1 + $0x1c] sm:$0xf]
  %v37 = vld [vmem:[%s1 + $0x20] sm:$0xf]
  %v38 = vld [vmem:[%s1 + $0x24] sm:$0xf]
  %v39 = vld [vmem:[%s1 + $0x28] sm:$0xf]
  %v40 = vld [vmem:[%s1 + $0x2c] sm:$0xf]
  %v41 = vld [vmem:[%s1 + $0x30] sm:$0xf]
  %v42 = vld [vmem:[%s1 + $0x34] sm:$0xf]
  %v43 = vld [vmem:[%s1 + $0x38] sm:$0xf]
  %v44 = vld [vmem:[%s1 + $0x3c] sm:$0xf]
  %v45 = vld [vmem:[%s1 + $0x40] sm:$0xf]
  %v46 = vld [vmem:[%s1 + $0x44] sm:$0xf]
  %v47 = vld [vmem:[%s1 + $0x48] sm:$0xf]
  %v48 = vld [vmem:[%s1 + $0x4c] sm:$0xf]
  %v49 = vld [vmem:[%s1 + $0x50] sm:$0xf]
  %v50 = vld [vmem:[%s1 + $0x54] sm:$0xf]
  %v51 = vld [vmem:[%s1 + $0x58] sm:$0xf]
  %v52 = vld [vmem:[%s1 + $0x5c] sm:$0xf]
  %v53 = vld [vmem:[%s1 + $0x60] sm:$0xf]
  %v54 = vld [vmem:[%s1 + $0x64] sm:$0xf]
  %v55 = vld [vmem:[%s1 + $0x68] sm:$0xf]
  %v56 = vld [vmem:[%s1 + $0x6c] sm:$0xf]
  %v57 = vld [vmem:[%s1 + $0x70] sm:$0xf]
  %v58 = vld [vmem:[%s1 + $0x74] sm:$0xf]
  %v59 = vld [vmem:[%s1 + $0x78] sm:$0xf]
  %v60 = vld [vmem:[%s1 + $0x7c] sm:$0xf]
  %v61 = vld [vmem:[%s1 + $0x80] sm:$0xf]
  %v62 = vld [vmem:[%s1 + $0x84] sm:$0xf]
  %v63 = vld [vmem:[%s1 + $0x88] sm:$0xf]
  %v64 = vld [vmem:[%s1 + $0x8c] sm:$0xf]
  %v65 = vld [vmem:[%s1 + $0x90] sm:$0xf]
  %v66 = vld [vmem:[%s1 + $0x94] sm:$0xf]
  %v67 = vld [vmem:[%s1 + $0x98] sm:$0xf]
  %v68 = vld [vmem:[%s1 + $0x9c] sm:$0xf]
  %v69 = vld [vmem:[%s1 + $0xa0] sm:$0xf]
  %v70 = vld [vmem:[%s1 + $0xa4] sm:$0xf]
  %v71 = vld [vmem:[%s1 + $0xa8] sm:$0xf]
  %v72 = vld [vmem:[%s1 + $0xac] sm:$0xf]
  %v73 = vld [vmem:[%s1 + $0xb0] sm:$0xf]
  %v74 = vld [vmem:[%s1 + $0xb4] sm:$0xf]
  %v75 = vld [vmem:[%s1 + $0xb8] sm:$0xf]
  %v76 = vld [vmem:[%s1 + $0xbc] sm:$0xf]
  %v77 = vld [vmem:[%s1 + $0xc0] sm:$0xf]
  %v78 = vld [vmem:[%s1 + $0xc4] sm:$0xf]
  %v79 = vld [vmem:[%s1 + $0xc8] sm:$0xf]
  %v80 = vld [vmem:[%s1 + $0xcc] sm:$0xf]
  %v81 = vld [vmem:[%s1 + $0xd0] sm:$0xf]
  %v82 = vld [vmem:[%s1 + $0xd4] sm:$0xf]
  %v83 = vld [vmem:[%s1 + $0xd8] sm:$0xf]
  %v84 = vld [vmem:[%s1 + $0xdc] sm:$0xf]
  %v85 = vld [vmem:[%s1 + $0xe0] sm:$0xf]
  %v86 = vld [vmem:[%s1 + $0xe4] sm:$0xf]
  %v87 = vld [vmem:[%s1 + $0xe8] sm:$0xf]
  %v88 = vld [vmem:[%s1 + $0xec] sm:$0xf]
  %v89 = vld [vmem:[%s1 + $0xf0] sm:$0xf]
  %v90 = vld [vmem:[%s1 + $0xf4] sm:$0xf]
  %v91 = vld [vmem:[%s1 + $0xf8] sm:$0xf]
  %v92 = vld [vmem:[%s1 + $0xfc] sm:$0xf]
  %v93 = vld [vmem:[%s1 + $0x100] sm:$0xf]
  %v94 = vld [vmem:[%s1 + $0x104] sm:$0xf]
  %v95 = vld [vmem:[%s1 + $0x108] sm:$0xf]
  %v96 = vld [vmem:[%s1 + $0x10c] sm:$0xf]
  %v97 = vld [vmem:[%s1 + $0x110] sm:$0xf]
  %v98 = vld [vmem:[%s1 + $0x114] sm:$0xf]
  %v99 = vld [vmem:[%s1 + $0x118] sm:$0xf]
  %v100 = vld [vmem:[%s1 + $0x11c] sm:$0xf]
  %v101 = vld [vmem:[%s1 + $0x120] sm:$0xf]
  %v102 = vld [vmem:[%s1 + $0x124] sm:$0xf]
  %v103 = vld [vmem:[%s1 + $0x128] sm:$0xf]
  %v104 = vld [vmem:[%s1 + $0x12c] sm:$0xf]
  %v105 = vld [vmem:[%s1 + $0x130] sm:$0xf]
  %v106 = vld [vmem:[%s1 + $0x134] sm:$0xf]
  %v107 = vld [vmem:[%s1 + $0x138] sm:$0xf]
  %v108 = vld [vmem:[%s1 + $0x13c] sm:$0xf]
  %v109 = vld [vmem:[%s1 + $0x140] sm:$0xf]
  %v110 = vld [vmem:[%s1 + $0x144] sm:$0xf]
  %v111 = vld [vmem:[%s1 + $0x148] sm:$0xf]
  %v112 = vld [vmem:[%s1 + $0x14c] sm:$0xf]
  %v113 = vld [vmem:[%s1 + $0x150] sm:$0xf]
  %v114 = vld [vmem:[%s1 + $0x154] sm:$0xf]
  %v115 = vld [vmem:[%s1 + $0x158] sm:$0xf]
  %v116 = vld [vmem:[%s1 + $0x15c] sm:$0xf]
  %v117 = vld [vmem:[%s1 + $0x160] sm:$0xf]
  %v118 = vld [vmem:[%s1 + $0x164] sm:$0xf]
  %v119 = vld [vmem:[%s1 + $0x168] sm:$0xf]
  %v120 = vld [vmem:[%s1 + $0x16c] sm:$0xf]
  %v121 = vld [vmem:[%s1 + $0x170] sm:$0xf]
  %v122 = vld [vmem:[%s1 + $0x174] sm:$0xf]
  %v123 = vld [vmem:[%s1 + $0x178] sm:$0xf]
  %v124 = vld [vmem:[%s1 + $0x17c] sm:$0xf]
  %v125 = vld [vmem:[%s1 + $0x180] sm:$0xf]
  %v126 = vld [vmem:[%s1 + $0x184] sm:$0xf]
  %v127 = vld [vmem:[%s1 + $0x188] sm:$0xf]
  %v128 = vld [vmem:[%s1 + $0x18c] sm:$0xf]
  %v129 = vld [vmem:[%s1 + $0x190] sm:$0xf]
  %v130 = vld [vmem:[%s1 + $0x194] sm:$0xf]
  %v131 = vld [vmem:[%s1 + $0x198] sm:$0xf]
  %v132 = vld [vmem:[%s1 + $0x19c] sm:$0xf]
  %v133 = vld [vmem:[%s1 + $0x1a0] sm:$0xf]
  %v134 = vld [vmem:[%s1 + $0x1a4] sm:$0xf]
  %v135 = vld [vmem:[%s1 + $0x1a8] sm:$0xf]
  %v136 = vld [vmem:[%s1 + $0x1ac] sm:$0xf]
  %v137 = vld [vmem:[%s1 + $0x1b0] sm:$0xf]
  %v138 = vld [vmem:[%s1 + $0x1b4] sm:$0xf]
  %v139 = vld [vmem:[%s1 + $0x1b8] sm:$0xf]
  %v140 = vld [vmem:[%s1 + $0x1bc] sm:$0xf]
  %v141 = vld [vmem:[%s1 + $0x1c0] sm:$0xf]
  %v142 = vld [vmem:[%s1 + $0x1c4] sm:$0xf]
  %v143 = vld [vmem:[%s1 + $0x1c8] sm:$0xf]
  %v144 = vld [vmem:[%s1 + $0x1cc] sm:$0xf]
  %v145 = vld [vmem:[%s1 + $0x1d0] sm:$0xf]
  %v146 = vld [vmem:[%s1 + $0x1d4] sm:$0xf]
  %v147 = vld [vmem:[%s1 + $0x1d8] sm:$0xf]
  %v148 = vld [vmem:[%s1 + $0x1dc] sm:$0xf]
  %v149 = vld [vmem:[%s1 + $0x1e0] sm:$0xf]
  %v150 = vld [vmem:[%s1 + $0x1e4] sm:$0xf]
  %v151 = vld [vmem:[%s1 + $0x1e8] sm:$0xf]
  %v152 = vld [vmem:[%s1 + $0x1ec] sm:$0xf]
  %v153 = vld [vmem:[%s1 + $0x1f0] sm:$0xf]
  %v154 = vld [vmem:[%s1 + $0x1f4] sm:$0xf]
  %v155 = vld [vmem:[%s1 + $0x1f8] sm:$0xf]
  %v156 = vld [vmem:[%s1 + $0x1fc] sm:$0xf]
  %v165 = vunpack.c.l.b16 %v21
  %v166 = vunpack.c.h.b16 %v21
  %v167 = vunpack.c.l.b16 %v22
  %v168 = vunpack.c.h.b16 %v22
  %v169 = vunpack.c.l.b16 %v23
  %v170 = vunpack.c.h.b16 %v23
  %v171 = vunpack.c.l.b16 %v24
  %v172 = vunpack.c.h.b16 %v24
  %v173 = vunpack.c.l.b16 %v25
  %v174 = vunpack.c.h.b16 %v25
  %v175 = vunpack.c.l.b16 %v26
  %v176 = vunpack.c.h.b16 %v26
  %v177 = vunpack.c.l.b16 %v27
  %v178 = vunpack.c.h.b16 %v27
  %v179 = vunpack.c.l.b16 %v28
  %v180 = vunpack.c.h.b16 %v28
  %v181 = vpack.c.b16 %v173, %v165
  %v182 = vpack.c.b16 %v174, %v166
  %v183 = vpack.c.b16 %v175, %v167
  %v184 = vpack.c.b16 %v176, %v168
  %v185 = vpack.c.b16 %v177, %v169
  %v186 = vpack.c.b16 %v178, %v170
  %v187 = vpack.c.b16 %v179, %v171
  %v188 = vpack.c.b16 %v180, %v172
  %v325 = vunpack.c.l.b16 %v29
  %v326 = vunpack.c.l.b16 %v30
  %v327 = vunpack.c.l.b16 %v31
  %v328 = vunpack.c.l.b16 %v32
  %v329 = vunpack.c.l.b16 %v33
  %v330 = vunpack.c.l.b16 %v34
  %v331 = vunpack.c.l.b16 %v35
  %v332 = vunpack.c.l.b16 %v36
  %v333 = vunpack.c.l.b16 %v37
  %v334 = vunpack.c.l.b16 %v38
  %v335 = vunpack.c.l.b16 %v39
  %v336 = vunpack.c.l.b16 %v40
  %v337 = vunpack.c.l.b16 %v41
  %v338 = vunpack.c.l.b16 %v42
  %v339 = vunpack.c.l.b16 %v43
  %v340 = vunpack.c.l.b16 %v44
  %v341 = vunpack.c.l.b16 %v45
  %v342 = vunpack.c.l.b16 %v46
  %v343 = vunpack.c.l.b16 %v47
  %v344 = vunpack.c.l.b16 %v48
  %v345 = vunpack.c.l.b16 %v49
  %v346 = vunpack.c.l.b16 %v50
  %v347 = vunpack.c.l.b16 %v51
  %v348 = vunpack.c.l.b16 %v52
  %v349 = vunpack.c.l.b16 %v53
  %v350 = vunpack.c.l.b16 %v54
  %v351 = vunpack.c.l.b16 %v55
  %v352 = vunpack.c.l.b16 %v56
  %v353 = vunpack.c.l.b16 %v57
  %v354 = vunpack.c.l.b16 %v58
  %v355 = vunpack.c.l.b16 %v59
  %v356 = vunpack.c.l.b16 %v60
  %v357 = vunpack.c.l.b16 %v61
  %v358 = vunpack.c.l.b16 %v62
  %v359 = vunpack.c.l.b16 %v63
  %v360 = vunpack.c.l.b16 %v64
  %v361 = vunpack.c.l.b16 %v65
  %v362 = vunpack.c.l.b16 %v66
  %v363 = vunpack.c.l.b16 %v67
  %v364 = vunpack.c.l.b16 %v68
  %v365 = vunpack.c.l.b16 %v69
  %v366 = vunpack.c.l.b16 %v70
  %v367 = vunpack.c.l.b16 %v71
  %v368 = vunpack.c.l.b16 %v72
  %v369 = vunpack.c.l.b16 %v73
  %v370 = vunpack.c.l.b16 %v74
  %v371 = vunpack.c.l.b16 %v75
  %v372 = vunpack.c.l.b16 %v76
  %v373 = vunpack.c.l.b16 %v77
  %v374 = vunpack.c.l.b16 %v78
  %v375 = vunpack.c.l.b16 %v79
  %v376 = vunpack.c.l.b16 %v80
  %v377 = vunpack.c.l.b16 %v81
  %v378 = vunpack.c.l.b16 %v82
  %v379 = vunpack.c.l.b16 %v83
  %v380 = vunpack.c.l.b16 %v84
  %v381 = vunpack.c.l.b16 %v85
  %v382 = vunpack.c.l.b16 %v86
  %v383 = vunpack.c.l.b16 %v87
  %v384 = vunpack.c.l.b16 %v88
  %v385 = vunpack.c.l.b16 %v89
  %v386 = vunpack.c.l.b16 %v90
  %v387 = vunpack.c.l.b16 %v91
  %v388 = vunpack.c.l.b16 %v92
  %v389 = vunpack.c.l.b16 %v93
  %v390 = vunpack.c.l.b16 %v94
  %v391 = vunpack.c.l.b16 %v95
  %v392 = vunpack.c.l.b16 %v96
  %v393 = vunpack.c.l.b16 %v97
  %v394 = vunpack.c.l.b16 %v98
  %v395 = vunpack.c.l.b16 %v99
  %v396 = vunpack.c.l.b16 %v100
  %v397 = vunpack.c.l.b16 %v101
  %v398 = vunpack.c.l.b16 %v102
  %v399 = vunpack.c.l.b16 %v103
  %v400 = vunpack.c.l.b16 %v104
  %v401 = vunpack.c.l.b16 %v105
  %v402 = vunpack.c.l.b16 %v106
  %v403 = vunpack.c.l.b16 %v107
  %v404 = vunpack.c.l.b16 %v108
  %v405 = vunpack.c.l.b16 %v109
  %v406 = vunpack.c.l.b16 %v110
  %v407 = vunpack.c.l.b16 %v111
  %v408 = vunpack.c.l.b16 %v112
  %v409 = vunpack.c.l.b16 %v113
  %v410 = vunpack.c.l.b16 %v114
  %v411 = vunpack.c.l.b16 %v115
  %v412 = vunpack.c.l.b16 %v116
  %v413 = vunpack.c.l.b16 %v117
  %v414 = vunpack.c.l.b16 %v118
  %v415 = vunpack.c.l.b16 %v119
  %v416 = vunpack.c.l.b16 %v120
  %v417 = vunpack.c.l.b16 %v121
  %v418 = vunpack.c.l.b16 %v122
  %v419 = vunpack.c.l.b16 %v123
  %v420 = vunpack.c.l.b16 %v124
  %v421 = vunpack.c.l.b16 %v125
  %v422 = vunpack.c.l.b16 %v126
  %v423 = vunpack.c.l.b16 %v127
  %v424 = vunpack.c.l.b16 %v128
  %v425 = vunpack.c.l.b16 %v129
  %v426 = vunpack.c.l.b16 %v130
  %v427 = vunpack.c.l.b16 %v131
  %v428 = vunpack.c.l.b16 %v132
  %v429 = vunpack.c.l.b16 %v133
  %v430 = vunpack.c.l.b16 %v134
  %v431 = vunpack.c.l.b16 %v135
  %v432 = vunpack.c.l.b16 %v136
  %v433 = vunpack.c.l.b16 %v137
  %v434 = vunpack.c.l.b16 %v138
  %v435 = vunpack.c.l.b16 %v139
  %v436 = vunpack.c.l.b16 %v140
  %v437 = vunpack.c.l.b16 %v141
  %v438 = vunpack.c.l.b16 %v142
  %v439 = vunpack.c.l.b16 %v143
  %v440 = vunpack.c.l.b16 %v144
  %v441 = vunpack.c.l.b16 %v145
  %v442 = vunpack.c.l.b16 %v146
  %v443 = vunpack.c.l.b16 %v147
  %v444 = vunpack.c.l.b16 %v148
  %v445 = vunpack.c.l.b16 %v149
  %v446 = vunpack.c.l.b16 %v150
  %v447 = vunpack.c.l.b16 %v151
  %v448 = vunpack.c.l.b16 %v152
  %v449 = vunpack.c.l.b16 %v153
  %v450 = vunpack.c.l.b16 %v154
  %v451 = vunpack.c.l.b16 %v155
  %v452 = vunpack.c.l.b16 %v156
  %v453 = vpack.c.b16 %v326, %v325
  %v454 = vpack.c.b16 %v328, %v327
  %v455 = vpack.c.b16 %v330, %v329
  %v456 = vpack.c.b16 %v332, %v331
  %v457 = vpack.c.b16 %v334, %v333
  %v458 = vpack.c.b16 %v336, %v335
  %v459 = vpack.c.b16 %v338, %v337
  %v460 = vpack.c.b16 %v340, %v339
  %v461 = vpack.c.b16 %v342, %v341
  %v462 = vpack.c.b16 %v344, %v343
  %v463 = vpack.c.b16 %v346, %v345
  %v464 = vpack.c.b16 %v348, %v347
  %v465 = vpack.c.b16 %v350, %v349
  %v466 = vpack.c.b16 %v352, %v351
  %v467 = vpack.c.b16 %v354, %v353
  %v468 = vpack.c.b16 %v356, %v355
  %v469 = vpack.c.b16 %v358, %v357
  %v470 = vpack.c.b16 %v360, %v359
  %v471 = vpack.c.b16 %v362, %v361
  %v472 = vpack.c.b16 %v364, %v363
  %v473 = vpack.c.b16 %v366, %v365
  %v474 = vpack.c.b16 %v368, %v367
  %v475 = vpack.c.b16 %v370, %v369
  %v476 = vpack.c.b16 %v372, %v371
  %v477 = vpack.c.b16 %v374, %v373
  %v478 = vpack.c.b16 %v376, %v375
  %v479 = vpack.c.b16 %v378, %v377
  %v480 = vpack.c.b16 %v380, %v379
  %v481 = vpack.c.b16 %v382, %v381
  %v482 = vpack.c.b16 %v384, %v383
  %v483 = vpack.c.b16 %v386, %v385
  %v484 = vpack.c.b16 %v388, %v387
  %v485 = vpack.c.b16 %v390, %v389
  %v486 = vpack.c.b16 %v392, %v391
  %v487 = vpack.c.b16 %v394, %v393
  %v488 = vpack.c.b16 %v396, %v395
  %v489 = vpack.c.b16 %v398, %v397
  %v490 = vpack.c.b16 %v400, %v399
  %v491 = vpack.c.b16 %v402, %v401
  %v492 = vpack.c.b16 %v404, %v403
  %v493 = vpack.c.b16 %v406, %v405
  %v494 = vpack.c.b16 %v408, %v407
  %v495 = vpack.c.b16 %v410, %v409
  %v496 = vpack.c.b16 %v412, %v411
  %v497 = vpack.c.b16 %v414, %v413
  %v498 = vpack.c.b16 %v416, %v415
  %v499 = vpack.c.b16 %v418, %v417
  %v500 = vpack.c.b16 %v420, %v419
  %v501 = vpack.c.b16 %v422, %v421
  %v502 = vpack.c.b16 %v424, %v423
  %v503 = vpack.c.b16 %v426, %v425
  %v504 = vpack.c.b16 %v428, %v427
  %v505 = vpack.c.b16 %v430, %v429
  %v506 = vpack.c.b16 %v432, %v431
  %v507 = vpack.c.b16 %v434, %v433
  %v508 = vpack.c.b16 %v436, %v435
  %v509 = vpack.c.b16 %v438, %v437
  %v510 = vpack.c.b16 %v440, %v439
  %v511 = vpack.c.b16 %v442, %v441
  %v512 = vpack.c.b16 %v444, %v443
  %v513 = vpack.c.b16 %v446, %v445
  %v514 = vpack.c.b16 %v448, %v447
  %v515 = vpack.c.b16 %v450, %v449
  %v516 = vpack.c.b16 %v452, %v451
  %581 = vmatpush.bf16.msra.mxu0 %v460
  %582 = vmatpush.bf16.msra.mxu0 %v459
  %583 = vmatpush.bf16.msra.mxu0 %v458
  %584 = vmatpush.bf16.msra.mxu0 %v457
  %585 = vmatpush.bf16.msra.mxu0 %v456
  %586 = vmatpush.bf16.msra.mxu0 %v455
  %587 = vmatpush.bf16.msra.mxu0 %v454
  %588 = vmatpush.bf16.msra.mxu0 %v453
  %589 = vmatmul.bf16.gmra.mxu0 %v181
  %v590 = vpop.f32.mrf.mxu0
  %v591 = vadd.f32 0.0, %v590
  %v592 = vpop.f32.mrf.mxu0
  %v593 = vadd.f32 0.0, %v592
  %594 = vdwg.mxu0
  %595 = vmatpush.bf16.msra.mxu0 %v468
  %596 = vmatpush.bf16.msra.mxu0 %v467
  %597 = vmatpush.bf16.msra.mxu0 %v466
  %598 = vmatpush.bf16.msra.mxu0 %v465
  %599 = vmatpush.bf16.msra.mxu0 %v464
  %600 = vmatpush.bf16.msra.mxu0 %v463
  %601 = vmatpush.bf16.msra.mxu0 %v462
  %602 = vmatpush.bf16.msra.mxu0 %v461
  %603 = vmatmul.bf16.gmra.mxu0 %v182
  %v604 = vpop.f32.mrf.mxu0
  %v605 = vadd.f32 %v591, %v604
  %v606 = vpop.f32.mrf.mxu0
  %v607 = vadd.f32 %v593, %v606
  %608 = vdwg.mxu0
  %609 = vmatpush.bf16.msra.mxu0 %v476
  %610 = vmatpush.bf16.msra.mxu0 %v475
  %611 = vmatpush.bf16.msra.mxu0 %v474
  %612 = vmatpush.bf16.msra.mxu0 %v473
  %613 = vmatpush.bf16.msra.mxu0 %v472
  %614 = vmatpush.bf16.msra.mxu0 %v471
  %615 = vmatpush.bf16.msra.mxu0 %v470
  %616 = vmatpush.bf16.msra.mxu0 %v469
  %617 = vmatmul.bf16.gmra.mxu0 %v183
  %v618 = vpop.f32.mrf.mxu0
  %v619 = vadd.f32 %v605, %v618
  %v620 = vpop.f32.mrf.mxu0
  %v621 = vadd.f32 %v607, %v620
  %622 = vdwg.mxu0
  %623 = vmatpush.bf16.msra.mxu0 %v484
  %624 = vmatpush.bf16.msra.mxu0 %v483
  %625 = vmatpush.bf16.msra.mxu0 %v482
  %626 = vmatpush.bf16.msra.mxu0 %v481
  %627 = vmatpush.bf16.msra.mxu0 %v480
  %628 = vmatpush.bf16.msra.mxu0 %v479
  %629 = vmatpush.bf16.msra.mxu0 %v478
  %630 = vmatpush.bf16.msra.mxu0 %v477
  %631 = vmatmul.bf16.gmra.mxu0 %v184
  %v632 = vpop.f32.mrf.mxu0
  %v633 = vadd.f32 %v619, %v632
  %v634 = vpop.f32.mrf.mxu0
  %v635 = vadd.f32 %v621, %v634
  %636 = vdwg.mxu0
  %637 = vmatpush.bf16.msra.mxu0 %v492
  %638 = vmatpush.bf16.msra.mxu0 %v491
  %639 = vmatpush.bf16.msra.mxu0 %v490
  %640 = vmatpush.bf16.msra.mxu0 %v489
  %641 = vmatpush.bf16.msra.mxu0 %v488
  %642 = vmatpush.bf16.msra.mxu0 %v487
  %643 = vmatpush.bf16.msra.mxu0 %v486
  %644 = vmatpush.bf16.msra.mxu0 %v485
  %645 = vmatmul.bf16.gmra.mxu0 %v185
  %v646 = vpop.f32.mrf.mxu0
  %v647 = vadd.f32 %v633, %v646
  %v648 = vpop.f32.mrf.mxu0
  %v649 = vadd.f32 %v635, %v648
  %650 = vdwg.mxu0
  %651 = vmatpush.bf16.msra.mxu0 %v500
  %652 = vmatpush.bf16.msra.mxu0 %v499
  %653 = vmatpush.bf16.msra.mxu0 %v498
  %654 = vmatpush.bf16.msra.mxu0 %v497
  %655 = vmatpush.bf16.msra.mxu0 %v496
  %656 = vmatpush.bf16.msra.mxu0 %v495
  %657 = vmatpush.bf16.msra.mxu0 %v494
  %658 = vmatpush.bf16.msra.mxu0 %v493
  %659 = vmatmul.bf16.gmra.mxu0 %v186
  %v660 = vpop.f32.mrf.mxu0
  %v661 = vadd.f32 %v647, %v660
  %v662 = vpop.f32.mrf.mxu0
  %v663 = vadd.f32 %v649, %v662
  %664 = vdwg.mxu0
  %665 = vmatpush.bf16.msra.mxu0 %v508
  %666 = vmatpush.bf16.msra.mxu0 %v507
  %667 = vmatpush.bf16.msra.mxu0 %v506
  %668 = vmatpush.bf16.msra.mxu0 %v505
  %669 = vmatpush.bf16.msra.mxu0 %v504
  %670 = vmatpush.bf16.msra.mxu0 %v503
  %671 = vmatpush.bf16.msra.mxu0 %v502
  %672 = vmatpush.bf16.msra.mxu0 %v501
  %673 = vmatmul.bf16.gmra.mxu0 %v187
  %v674 = vpop.f32.mrf.mxu0
  %v675 = vadd.f32 %v661, %v674
  %v676 = vpop.f32.mrf.mxu0
  %v677 = vadd.f32 %v663, %v676
  %678 = vdwg.mxu0
  %679 = vmatpush.bf16.msra.mxu0 %v516
  %680 = vmatpush.bf16.msra.mxu0 %v515
  %681 = vmatpush.bf16.msra.mxu0 %v514
  %682 = vmatpush.bf16.msra.mxu0 %v513
  %683 = vmatpush.bf16.msra.mxu0 %v512
  %684 = vmatpush.bf16.msra.mxu0 %v511
  %685 = vmatpush.bf16.msra.mxu0 %v510
  %686 = vmatpush.bf16.msra.mxu0 %v509
  %687 = vmatmul.bf16.gmra.mxu0 %v188
  %v688 = vpop.f32.mrf.mxu0
  %v689 = vadd.f32 %v675, %v688
  %v690 = vpop.f32.mrf.mxu0
  %v691 = vadd.f32 %v677, %v690
  %692 = vdwg.mxu0
  %v693 = vmax.f32 %v689, 0.0
  %v694 = vmax.f32 %v691, 0.0
  %v695 = vpack.c.bf16 %v694, %v693
  %v696 = vld [vmem:[%s2] sm:$0xf]
  %v697 = vld [vmem:[%s2 + $0x4] sm:$0xf]
  %v698 = vld [vmem:[%s2 + $0x8] sm:$0xf]
  %v699 = vld [vmem:[%s2 + $0xc] sm:$0xf]
  %v704 = vunpack.c.l.b16 %v696
  %v705 = vunpack.c.l.b16 %v697
  %v706 = vunpack.c.l.b16 %v698
  %v707 = vunpack.c.l.b16 %v699
  %v708 = vpack.c.b16 %v705, %v704
  %v709 = vpack.c.b16 %v707, %v706
  %vm712 = vcmask 261120
  %v714 = vsel %vm712, %v695, 0
  %716 = vmatpush.bf16.msra.mxu0 0
  %717 = vmatpush.bf16.msra.mxu0 0
  %718 = vmatpush.bf16.msra.mxu0 0
  %719 = vmatpush.bf16.msra.mxu0 0
  %720 = vmatpush.bf16.msra.mxu0 0
  %721 = vmatpush.bf16.msra.mxu0 0
  %722 = vmatpush.bf16.msra.mxu0 %v709
  %723 = vmatpush.bf16.msra.mxu0 %v708
  %724 = vmatmul.bf16.gmra.mxu0 %v714
  %v725 = vpop.f32.mrf.mxu0
  %v726 = vadd.f32 0.0, %v725
  %v727 = vpop.f32.mrf.mxu0
  %v728 = vadd.f32 0.0, %v727
  %729 = vdwg.mxu0
  %v730 = vmax.f32 %v726, 0.0
  %v731 = vmax.f32 %v728, 0.0
  %v732 = vpack.c.bf16 %v731, %v730
  %v733 = vld [vmem:[%s3] sm:$0xf]
  %v734 = vld [vmem:[%s3 + $0x4] sm:$0xf]
  %v735 = vld [vmem:[%s3 + $0x8] sm:$0xf]
  %v736 = vld [vmem:[%s3 + $0xc] sm:$0xf]
  %v741 = vunpack.c.l.b16 %v733
  %v742 = vunpack.c.l.b16 %v734
  %v743 = vunpack.c.l.b16 %v735
  %v744 = vunpack.c.l.b16 %v736
  %v745 = vpack.c.b16 %v742, %v741
  %v746 = vpack.c.b16 %v744, %v743
  %v750 = vsel %vm712, %v732, 0
  %752 = vmatpush.bf16.msra.mxu0 0
  %753 = vmatpush.bf16.msra.mxu0 0
  %754 = vmatpush.bf16.msra.mxu0 0
  %755 = vmatpush.bf16.msra.mxu0 0
  %756 = vmatpush.bf16.msra.mxu0 0
  %757 = vmatpush.bf16.msra.mxu0 0
  %758 = vmatpush.bf16.msra.mxu0 %v746
  %759 = vmatpush.bf16.msra.mxu0 %v745
  %760 = vmatmul.bf16.gmra.mxu0 %v750
  %v761 = vpop.f32.mrf.mxu0
  %v762 = vadd.f32 %v693, %v761
  %v763 = vpop.f32.mrf.mxu0
  %v764 = vadd.f32 %v694, %v763
  %765 = vdwg.mxu0
  %v766 = vmax.f32 %v762, 0.0
  %v767 = vmax.f32 %v764, 0.0
  %v768 = vpack.c.bf16 %v767, %v766
  %v769 = vld [vmem:[%s4] sm:$0xf]
  %v770 = vld [vmem:[%s4 + $0x4] sm:$0xf]
  %v771 = vld [vmem:[%s4 + $0x8] sm:$0xf]
  %v772 = vld [vmem:[%s4 + $0xc] sm:$0xf]
  %v777 = vunpack.c.l.b16 %v769
  %v778 = vunpack.c.l.b16 %v770
  %v779 = vunpack.c.l.b16 %v771
  %v780 = vunpack.c.l.b16 %v772
  %v781 = vpack.c.b16 %v778, %v777
  %v782 = vpack.c.b16 %v780, %v779
  %v786 = vsel %vm712, %v768, 0
  %788 = vmatpush.bf16.msra.mxu0 0
  %789 = vmatpush.bf16.msra.mxu0 0
  %790 = vmatpush.bf16.msra.mxu0 0
  %791 = vmatpush.bf16.msra.mxu0 0
  %792 = vmatpush.bf16.msra.mxu0 0
  %793 = vmatpush.bf16.msra.mxu0 0
  %794 = vmatpush.bf16.msra.mxu0 %v782
  %795 = vmatpush.bf16.msra.mxu0 %v781
  %796 = vmatmul.bf16.gmra.mxu0 %v786
  %v797 = vpop.f32.mrf.mxu0
  %v798 = vadd.f32 0.0, %v797
  %v799 = vpop.f32.mrf.mxu0
  %v800 = vadd.f32 0.0, %v799
  %801 = vdwg.mxu0
  %vm802 = vcmask 80896
  %803 = vst.msk [vmem:[%s5] sm:$0xff] %vm802, %v798
  %804 = vst.msk [vmem:[%s5 + $0x8] sm:$0xff] %vm802, %v800
  // Predicated region
  $region22: #{pnn_forward.1} parent=0 // pred_check
    _
  $region23: #{pnn_forward.1} parent=0 // pred_check_branch
    %806 = sbr.rel (0) target = $region25
  $region24: #{pnn_forward.1} parent=0 // pred_region
    _
  $region25: #{pnn_forward.1} parent=0 // pred_fallthru
    _
  // Predicated region
  $region26: #{pnn_forward.1} parent=0 // pred_check
    _
  $region27: #{pnn_forward.1} parent=0 // pred_check_branch
    %808 = sbr.rel (0) target = $region29
  $region28: #{pnn_forward.1} parent=0 // pred_region
    _
  $region29: #{pnn_forward.1} parent=0 // pred_fallthru
    _

</llo_original>
